<compile_context>
chip_gen: v5e
topology: v5e:2x2
jax: 0.10.0
libtpu: 0.0.40
codegen_flags: <defaults>
</compile_context>

<pallas_src>
import jax
import jax.numpy as jnp
from jax.experimental import pallas as pl
from jax.experimental.pallas import tpu as pltpu

NN_LAYER_1 = 256
NN_LAYER_2 = 256


def _round_up(x, m):
    return (x + m - 1) // m * m


def _qnet_kernel(xs_ref, xa_ref, w1s_ref, w1a_ref, b1_ref, w2_ref, b2_ref,
                 w3_ref, b3_ref, q_ref):
    # ---- fc1 + ReLU: concat fused as two small matmuls (f32, tiny K) --------
    xs = xs_ref[...].astype(jnp.float32)          # (TB, state_dim)
    xa = xa_ref[...].astype(jnp.float32)          # (TB, act_dim)
    h1 = (jnp.dot(xs, w1s_ref[...], preferred_element_type=jnp.float32)
          + jnp.dot(xa, w1a_ref[...], preferred_element_type=jnp.float32)
          + b1_ref[...])
    h1 = jnp.maximum(h1, 0.0)                     # (TB, 256) f32

    # ---- fc2 + ReLU: bf16 MXU matmul with f32 accumulation ------------------
    h2 = jnp.dot(h1.astype(jnp.bfloat16), w2_ref[...],
                 preferred_element_type=jnp.float32) + b2_ref[...]
    h2 = jnp.maximum(h2, 0.0)                     # (TB, 256) f32

    # ---- fc_out: contract the 256 features against the single w3 row,
    # producing a lane-dense (1, TB) tile (avoids the N=1 / masked-store output)
    q = jnp.dot(w3_ref[...], h2.astype(jnp.bfloat16).T,
                preferred_element_type=jnp.float32) + b3_ref[...]   # (1, TB)
    q_ref[...] = q[None]                          # (1, 1, TB)


def double_q_net_forward(state, action, params, *, block_b=512):
    """Pallas forward matching DoubleQNet.forward(state, action) -> (B, 1)."""
    w1s, w1a, b1, w2, b2, w3, b3 = params
    B, state_dim = state.shape
    act_dim = action.shape[1]
    h1_dim = w1s.shape[1]
    h2_dim = w2.shape[1]

    # Batch tile: multiple of 128 so the (1, TB) output tile is lane-dense.
    block_b = _round_up(block_b, 128)
    TB = min(block_b, max(128, _round_up(B, 128)))
    Bp = _round_up(B, TB)
    num_tiles = Bp // TB

    if Bp != B:  # zero-pad the tail tile; padded rows are sliced off below.
        pad = Bp - B
        state = jnp.pad(state, ((0, pad), (0, 0)))
        action = jnp.pad(action, ((0, pad), (0, 0)))

    # bf16 inputs: halves the x DMA traffic (dominant at large batch).
    xs = state.astype(jnp.bfloat16)
    xa = action.astype(jnp.bfloat16)

    const = lambda i: (0, 0)  # weights/biases: same block every step -> resident
    q_tiles = pl.pallas_call(
        _qnet_kernel,
        out_shape=jax.ShapeDtypeStruct((num_tiles, 1, TB), jnp.float32),
        grid=(num_tiles,),
        in_specs=[
            pl.BlockSpec((TB, state_dim), lambda i: (i, 0)),   # state tile
            pl.BlockSpec((TB, act_dim), lambda i: (i, 0)),     # action tile
            pl.BlockSpec((state_dim, h1_dim), const),          # w1s
            pl.BlockSpec((act_dim, h1_dim), const),            # w1a
            pl.BlockSpec((1, h1_dim), const),                  # b1
            pl.BlockSpec((h1_dim, h2_dim), const),             # w2 (bf16)
            pl.BlockSpec((1, h2_dim), const),                  # b2
            pl.BlockSpec((1, h2_dim), const),                  # w3 row (bf16)
            pl.BlockSpec((1, 1), const),                       # b3
        ],
        out_specs=pl.BlockSpec((1, 1, TB), lambda i: (i, 0, 0)),
        compiler_params=pltpu.CompilerParams(
            dimension_semantics=("parallel",)),                # v7x megacore
    )(xs, xa, w1s, w1a, b1, w2, b2, w3, b3)

    # Layout plumbing only: lane-dense slab -> (B, 1).
    return q_tiles.reshape(Bp, 1)[:B]


def init_double_q_net(key, state_dim, act_dim):
    """nn.Linear-style init (+/- 1/sqrt(fan_in)); returns kernel-layout params:
    (w1s, w1a, b1, w2[bf16], b2, w3_row[bf16], b3)."""
    in_dim = state_dim + act_dim

    def linear(key, fan_in, fan_out):
        kw, kb = jax.random.split(key)
        bound = 1.0 / (fan_in ** 0.5)
        w = jax.random.uniform(kw, (fan_in, fan_out), jnp.float32, -bound, bound)
        b = jax.random.uniform(kb, (1, fan_out), jnp.float32, -bound, bound)
        return w, b

    k1, k2, k3 = jax.random.split(key, 3)
    w1, b1 = linear(k1, in_dim, NN_LAYER_1)
    w2, b2 = linear(k2, NN_LAYER_1, NN_LAYER_2)
    w3, b3 = linear(k3, NN_LAYER_2, 1)            # w3: (256, 1)

    w1s, w1a = w1[:state_dim], w1[state_dim:]     # split: concat fused in kernel
    return (w1s, w1a, b1,
            w2.astype(jnp.bfloat16), b2,
            w3.T.astype(jnp.bfloat16),            # (1, 256) row
            b3.reshape(1, 1))


def _reference_forward(state, action, params):
    w1s, w1a, b1, w2, b2, w3, b3 = params
    x = jnp.concatenate([state, action], axis=1)
    w1 = jnp.concatenate([w1s, w1a], axis=0)
    h1 = jnp.maximum(x @ w1 + b1, 0.0)
    h2 = jnp.maximum(h1 @ w2.astype(jnp.float32) + b2, 0.0)
    return h2 @ w3.astype(jnp.float32).T + b3


if __name__ == "__main__":
    key = jax.random.PRNGKey(0)
    k_state, k_action, k_params = jax.random.split(key, 3)

    batch, state_dim, act_dim = 4, 8, 2
    state = jax.random.normal(k_state, (batch, state_dim), jnp.float32)
    action = jax.random.normal(k_action, (batch, act_dim), jnp.float32)
    params = init_double_q_net(k_params, state_dim, act_dim)

    # Tiny-batch path (single grid step, padded tile).
    q = jax.block_until_ready(double_q_net_forward(state, action, params))
    q_ref = _reference_forward(state, action, params)
    assert q.shape == (batch, 1)
    assert jnp.allclose(q, q_ref, atol=2e-2, rtol=2e-2), (
        f"max abs err {jnp.max(jnp.abs(q - q_ref))}")

    # Multi-tile path (exercises the batch grid + tail padding).
    B2 = 300
    state2 = jax.random.normal(jax.random.PRNGKey(1), (B2, state_dim), jnp.float32)
    action2 = jax.random.normal(jax.random.PRNGKey(2), (B2, act_dim), jnp.float32)
    q2 = jax.block_until_ready(
        double_q_net_forward(state2, action2, params, block_b=128))
    q2_ref = _reference_forward(state2, action2, params)
    assert q2.shape == (B2, 1)
    assert jnp.allclose(q2, q2_ref, atol=2e-2, rtol=2e-2), (
        f"max abs err {jnp.max(jnp.abs(q2 - q2_ref))}")

    print("KERNEL_OK")
</pallas_src>

<mosaic_0001>
module attributes {stable_mosaic.version = 11 : i64} {
  func.func @_qnet_kernel(%arg0: i32, %arg1: memref<128x8xbf16, #tpu.memory_space<vmem>>, %arg2: memref<128x2xbf16, #tpu.memory_space<vmem>>, %arg3: memref<8x256xf32, #tpu.memory_space<vmem>>, %arg4: memref<2x256xf32, #tpu.memory_space<vmem>>, %arg5: memref<1x256xf32, #tpu.memory_space<vmem>>, %arg6: memref<256x256xbf16, #tpu.memory_space<vmem>>, %arg7: memref<1x256xf32, #tpu.memory_space<vmem>>, %arg8: memref<1x256xbf16, #tpu.memory_space<vmem>>, %arg9: memref<1x1xf32, #tpu.memory_space<vmem>>, %arg10: memref<1x1x128xf32, #tpu.memory_space<vmem>>) attributes {dimension_semantics = [#tpu.dimension_semantics<parallel>], iteration_bounds = array<i64: 1>, scalar_prefetch = 0 : i64, scratch_operands = 0 : i64, tpu.core_type = #tpu.core_type<tc>, window_params = [{transform_indices = @transform_0, window_bounds = array<i64: 128, 8>}, {transform_indices = @transform_1, window_bounds = array<i64: 128, 2>}, {pipeline_mode = #tpu.pipeline_mode<synchronous>, transform_indices = @transform_2, window_bounds = array<i64: 8, 256>}, {pipeline_mode = #tpu.pipeline_mode<synchronous>, transform_indices = @transform_3, window_bounds = array<i64: 2, 256>}, {pipeline_mode = #tpu.pipeline_mode<synchronous>, transform_indices = @transform_4, window_bounds = array<i64: 1, 256>}, {pipeline_mode = #tpu.pipeline_mode<synchronous>, transform_indices = @transform_5, window_bounds = array<i64: 256, 256>}, {pipeline_mode = #tpu.pipeline_mode<synchronous>, transform_indices = @transform_6, window_bounds = array<i64: 1, 256>}, {pipeline_mode = #tpu.pipeline_mode<synchronous>, transform_indices = @transform_7, window_bounds = array<i64: 1, 256>}, {pipeline_mode = #tpu.pipeline_mode<synchronous>, transform_indices = @transform_8, window_bounds = array<i64: 1, 1>}, {transform_indices = @transform_9, window_bounds = array<i64: 1, 1, 128>}]} {
    %c0 = arith.constant 0 : index
    %c0_0 = arith.constant 0 : index
    %0 = vector.load %arg1[%c0, %c0_0] : memref<128x8xbf16, #tpu.memory_space<vmem>>, vector<128x8xbf16>
    %1 = arith.extf %0 : vector<128x8xbf16> to vector<128x8xf32>
    %c0_1 = arith.constant 0 : index
    %c0_2 = arith.constant 0 : index
    %2 = vector.load %arg2[%c0_1, %c0_2] : memref<128x2xbf16, #tpu.memory_space<vmem>>, vector<128x2xbf16>
    %3 = arith.extf %2 : vector<128x2xbf16> to vector<128x2xf32>
    %c0_3 = arith.constant 0 : index
    %c0_4 = arith.constant 0 : index
    %4 = vector.load %arg3[%c0_3, %c0_4] : memref<8x256xf32, #tpu.memory_space<vmem>>, vector<8x256xf32>
    %cst = arith.constant dense<0.000000e+00> : vector<128x256xf32>
    %5 = tpu.matmul %1, %4, %cst {dimension_numbers = #tpu.dot_dimension_numbers<[1], [0], [0], [1], [0, 0, 1, 1], [], []>} : vector<128x8xf32>, vector<8x256xf32>, vector<128x256xf32> -> vector<128x256xf32>
    %c0_5 = arith.constant 0 : index
    %c0_6 = arith.constant 0 : index
    %6 = vector.load %arg4[%c0_5, %c0_6] : memref<2x256xf32, #tpu.memory_space<vmem>>, vector<2x256xf32>
    %cst_7 = arith.constant dense<0.000000e+00> : vector<128x256xf32>
    %7 = tpu.matmul %3, %6, %cst_7 {dimension_numbers = #tpu.dot_dimension_numbers<[1], [0], [0], [1], [0, 0, 1, 1], [], []>} : vector<128x2xf32>, vector<2x256xf32>, vector<128x256xf32> -> vector<128x256xf32>
    %8 = arith.addf %5, %7 : vector<128x256xf32>
    %c0_8 = arith.constant 0 : index
    %c0_9 = arith.constant 0 : index
    %9 = vector.load %arg5[%c0_8, %c0_9] : memref<1x256xf32, #tpu.memory_space<vmem>>, vector<1x256xf32>
    %10 = vector.broadcast %9 : vector<1x256xf32> to vector<128x256xf32>
    %11 = arith.addf %8, %10 : vector<128x256xf32>
    %cst_10 = arith.constant 0.000000e+00 : f32
    %12 = vector.broadcast %cst_10 : f32 to vector<128x256xf32>
    %13 = arith.maximumf %11, %12 : vector<128x256xf32>
    %14 = arith.truncf %13 : vector<128x256xf32> to vector<128x256xbf16>
    %c0_11 = arith.constant 0 : index
    %c0_12 = arith.constant 0 : index
    %15 = vector.load %arg6[%c0_11, %c0_12] : memref<256x256xbf16, #tpu.memory_space<vmem>>, vector<256x256xbf16>
    %cst_13 = arith.constant dense<0.000000e+00> : vector<128x256xf32>
    %16 = tpu.matmul %14, %15, %cst_13 {dimension_numbers = #tpu.dot_dimension_numbers<[1], [0], [0], [1], [0, 0, 1, 1], [], []>} : vector<128x256xbf16>, vector<256x256xbf16>, vector<128x256xf32> -> vector<128x256xf32>
    %c0_14 = arith.constant 0 : index
    %c0_15 = arith.constant 0 : index
    %17 = vector.load %arg7[%c0_14, %c0_15] : memref<1x256xf32, #tpu.memory_space<vmem>>, vector<1x256xf32>
    %18 = vector.broadcast %17 : vector<1x256xf32> to vector<128x256xf32>
    %19 = arith.addf %16, %18 : vector<128x256xf32>
    %cst_16 = arith.constant 0.000000e+00 : f32
    %20 = vector.broadcast %cst_16 : f32 to vector<128x256xf32>
    %21 = arith.maximumf %19, %20 : vector<128x256xf32>
    %c0_17 = arith.constant 0 : index
    %c0_18 = arith.constant 0 : index
    %22 = vector.load %arg8[%c0_17, %c0_18] : memref<1x256xbf16, #tpu.memory_space<vmem>>, vector<1x256xbf16>
    %23 = arith.truncf %21 : vector<128x256xf32> to vector<128x256xbf16>
    %24 = tpu.transpose %23, [1, 0] : vector<128x256xbf16> -> vector<256x128xbf16>
    %cst_19 = arith.constant dense<0.000000e+00> : vector<1x128xf32>
    %25 = tpu.matmul %22, %24, %cst_19 {dimension_numbers = #tpu.dot_dimension_numbers<[1], [0], [0], [1], [0, 0, 1, 1], [], []>} : vector<1x256xbf16>, vector<256x128xbf16>, vector<1x128xf32> -> vector<1x128xf32>
    %c0_20 = arith.constant 0 : index
    %c0_21 = arith.constant 0 : index
    %26 = vector.load %arg9[%c0_20, %c0_21] : memref<1x1xf32, #tpu.memory_space<vmem>>, vector<1x1xf32>
    %27 = vector.broadcast %26 : vector<1x1xf32> to vector<1x128xf32>
    %28 = arith.addf %25, %27 : vector<1x128xf32>
    %29 = vector.shape_cast %28 : vector<1x128xf32> to vector<1x1x128xf32>
    %c0_22 = arith.constant 0 : index
    %c0_23 = arith.constant 0 : index
    %c0_24 = arith.constant 0 : index
    %30 = vector.load %arg10[%c0_22, %c0_23, %c0_24] : memref<1x1x128xf32, #tpu.memory_space<vmem>>, vector<1x1x128xf32>
    tpu.vector_store %arg10[%c0_22, %c0_23, %c0_24], %29 {strides = array<i32>} : memref<1x1x128xf32, #tpu.memory_space<vmem>>, vector<1x1x128xf32>,
    return
  }
  func.func @transform_0(%arg0: i32) -> (i32, i32) {
    %c0_i32 = arith.constant 0 : i32
    %c0_i32_0 = arith.constant 0 : i32
    return %arg0, %c0_i32 : i32, i32
  }
  func.func @transform_1(%arg0: i32) -> (i32, i32) {
    %c0_i32 = arith.constant 0 : i32
    %c0_i32_0 = arith.constant 0 : i32
    return %arg0, %c0_i32 : i32, i32
  }
  func.func @transform_2(%arg0: i32) -> (i32, i32) {
    %c0_i32 = arith.constant 0 : i32
    %c0_i32_0 = arith.constant 0 : i32
    %c0_i32_1 = arith.constant 0 : i32
    return %c0_i32, %c0_i32_0 : i32, i32
  }
  func.func @transform_3(%arg0: i32) -> (i32, i32) {
    %c0_i32 = arith.constant 0 : i32
    %c0_i32_0 = arith.constant 0 : i32
    %c0_i32_1 = arith.constant 0 : i32
    return %c0_i32, %c0_i32_0 : i32, i32
  }
  func.func @transform_4(%arg0: i32) -> (i32, i32) {
    %c0_i32 = arith.constant 0 : i32
    %c0_i32_0 = arith.constant 0 : i32
    %c0_i32_1 = arith.constant 0 : i32
    return %c0_i32, %c0_i32_0 : i32, i32
  }
  func.func @transform_5(%arg0: i32) -> (i32, i32) {
    %c0_i32 = arith.constant 0 : i32
    %c0_i32_0 = arith.constant 0 : i32
    %c0_i32_1 = arith.constant 0 : i32
    return %c0_i32, %c0_i32_0 : i32, i32
  }
  func.func @transform_6(%arg0: i32) -> (i32, i32) {
    %c0_i32 = arith.constant 0 : i32
    %c0_i32_0 = arith.constant 0 : i32
    %c0_i32_1 = arith.constant 0 : i32
    return %c0_i32, %c0_i32_0 : i32, i32
  }
  func.func @transform_7(%arg0: i32) -> (i32, i32) {
    %c0_i32 = arith.constant 0 : i32
    %c0_i32_0 = arith.constant 0 : i32
    %c0_i32_1 = arith.constant 0 : i32
    return %c0_i32, %c0_i32_0 : i32, i32
  }
  func.func @transform_8(%arg0: i32) -> (i32, i32) {
    %c0_i32 = arith.constant 0 : i32
    %c0_i32_0 = arith.constant 0 : i32
    %c0_i32_1 = arith.constant 0 : i32
    return %c0_i32, %c0_i32_0 : i32, i32
  }
  func.func @transform_9(%arg0: i32) -> (i32, i32, i32) {
    %c0_i32 = arith.constant 0 : i32
    %c0_i32_0 = arith.constant 0 : i32
    %c0_i32_1 = arith.constant 0 : i32
    return %arg0, %c0_i32, %c0_i32_0 : i32, i32, i32
  }
}

</mosaic_0001>

<llo_original>
// kernel: tpu_custom_call.1
$region0: #{tpu_custom_call.1}
  #allocation0 [shape = 'u32[]', space=smem, size = 0x4, offset = 0x4, fixed_abs, tag = 'smem constant byte address 0x4 - core index']
  #allocation1 [shape = 'u32[72,128]{1,0:T(1,128)}', space=vmem, size = 0x9000, scoped, tag = 'internal scratch']
  #allocation2 [shape = 'f32[1,1]{1,0:T(1,128)S(1)}', space=vmem, size = 0x200, scoped, tag = 'scoped memory for tpu_custom_call.1']
  %s0 = inlined_call_operand.vmem [shape: bf16[128,8], index: 0, kind: input, shape index: {}]
  %s1 = inlined_call_operand.vmem [shape: bf16[128,2], index: 1, kind: input, shape index: {}]
  %s2 = inlined_call_operand.vmem [shape: f32[8,256], index: 2, kind: input, shape index: {}]
  %s3 = inlined_call_operand.vmem [shape: f32[2,256], index: 3, kind: input, shape index: {}]
  %s4 = inlined_call_operand.vmem [shape: f32[1,256], index: 4, kind: input, shape index: {}]
  %s5 = inlined_call_operand.hbm [shape: bf16[256,256], index: 5, kind: input, shape index: {}]
  %s6 = inlined_call_operand.vmem [shape: f32[1,256], index: 6, kind: input, shape index: {}]
  %s7 = inlined_call_operand.vmem [shape: bf16[1,256], index: 7, kind: input, shape index: {}]
  %s8 = inlined_call_operand.<no memory space> [shape: f32[1,1], index: 8, kind: input, shape index: {}]
  %s9 = inlined_call_operand.hbm [shape: f32[1,1,128], index: 9, kind: output, shape index: {}]
  %s10 = sld [smem:[#allocation0]]
  $region50: #{tpu_custom_call.1} parent=0
    _
  %s12 = ssub.s32 1, %s10
  %s13 = scalar_select 0, %s12, %s10
  %v14 = vstv %s8
  %15 = vst [vmem:[#allocation2] sm:$0x1] %v14
  $region1: #{tpu_custom_call.1} parent=0
    #allocation3 [shape = 'u8[131072]{0}', space=vmem, size = 0x20000, scoped, tag = 'input window, operand 5, single buffered']
    #allocation4 [shape = 's32[1]{0}', space=sflag, size = 0x4, scoped, tag = 'scoped memory for tpu_custom_call.1']
    #allocation5 [shape = 's32[1]{0}', space=sflag, size = 0x4, scoped, tag = 'scoped memory for tpu_custom_call.1']
    #allocation6 [shape = 'u8[512]{0}', space=vmem, size = 0x400, scoped, tag = 'output window, operand 0, single buffered']
    %16 = vsyncpa [#allocation4], 0
    %17 = vsyncpa [#allocation5], 0
    // Predicated region
    $region2: #{tpu_custom_call.1} parent=1 // pred_check
      _
    $region3: #{tpu_custom_call.1} parent=1 // pred_check_branch
      %19 = sbr.rel (0) target = $region5
    $region4: #{tpu_custom_call.1} parent=1 // pred_region
      _
    $region5: #{tpu_custom_call.1} parent=1 // pred_fallthru
      _
    // Predicated region
    $region6: #{tpu_custom_call.1} parent=1 // pred_check
      _
    $region7: #{tpu_custom_call.1} parent=1 // pred_check_branch
      %21 = sbr.rel (0) target = $region9
    $region8: #{tpu_custom_call.1} parent=1 // pred_region
      _
    $region9: #{tpu_custom_call.1} parent=1 // pred_fallthru
      _
    // Predicated region
    $region10: #{tpu_custom_call.1} parent=1 // pred_check
      _
    $region11: #{tpu_custom_call.1} parent=1 // pred_check_branch
      %23 = sbr.rel (0) target = $region13
    $region12: #{tpu_custom_call.1} parent=1 // pred_region
      _
    $region13: #{tpu_custom_call.1} parent=1 // pred_fallthru
      _
    // Predicated region
    $region14: #{tpu_custom_call.1} parent=1 // pred_check
      _
    $region15: #{tpu_custom_call.1} parent=1 // pred_check_branch
      %25 = sbr.rel (0) target = $region17
    $region16: #{tpu_custom_call.1} parent=1 // pred_region
      _
    $region17: #{tpu_custom_call.1} parent=1 // pred_fallthru
      _
    // Predicated region
    $region18: #{tpu_custom_call.1} parent=1 // pred_check
      _
    $region19: #{tpu_custom_call.1} parent=1 // pred_check_branch
      %27 = sbr.rel (0) target = $region21
    $region20: #{tpu_custom_call.1} parent=1 // pred_region
      _
    $region21: #{tpu_custom_call.1} parent=1 // pred_fallthru
      _
    // Predicated region
    $region22: #{tpu_custom_call.1} parent=1 // pred_check
      _
    $region23: #{tpu_custom_call.1} parent=1 // pred_check_branch
      %29 = sbr.rel (0) target = $region25
    $region24: #{tpu_custom_call.1} parent=1 // pred_region
      %31 = vsyncadd [#allocation4], 0
      %s32 = sshll.u32 %s5, 4
      %s33 = int_to_ptr.hbm [resolvable:$true] %s32
      %s34 = sshll.u32 [#allocation3], 4
      %s35 = int_to_ptr.vmem [resolvable:$true] %s34
      %40 = dma.hbm_to_vmem [thread:$0]  %s33, 4096, %s35, [#allocation4], 128, 128, 8
    $region25: #{tpu_custom_call.1} parent=1 // pred_fallthru
      _
    // Predicated region
    $region26: #{tpu_custom_call.1} parent=1 // pred_check
      _
    $region27: #{tpu_custom_call.1} parent=1 // pred_check_branch
      %42 = sbr.rel (0) target = $region29
    $region28: #{tpu_custom_call.1} parent=1 // pred_region
      _
    $region29: #{tpu_custom_call.1} parent=1 // pred_fallthru
      _
    // Predicated region
    $region30: #{tpu_custom_call.1} parent=1 // pred_check
      _
    $region31: #{tpu_custom_call.1} parent=1 // pred_check_branch
      %44 = sbr.rel (0) target = $region33
    $region32: #{tpu_custom_call.1} parent=1 // pred_region
      _
    $region33: #{tpu_custom_call.1} parent=1 // pred_fallthru
      _
    // Predicated region
    $region34: #{tpu_custom_call.1} parent=1 // pred_check
      _
    $region35: #{tpu_custom_call.1} parent=1 // pred_check_branch
      %46 = sbr.rel (0) target = $region37
    $region36: #{tpu_custom_call.1} parent=1 // pred_region
      _
    $region37: #{tpu_custom_call.1} parent=1 // pred_fallthru
      _
    // Predicated region
    $region38: #{tpu_custom_call.1} parent=1 // pred_check
      _
    $region39: #{tpu_custom_call.1} parent=1 // pred_check_branch
      %48 = sbr.rel (0) target = $region41
    $region40: #{tpu_custom_call.1} parent=1 // pred_region
      %50 = dma.done [#allocation4], 4096
    $region41: #{tpu_custom_call.1} parent=1 // pred_fallthru
      _
    %v51 = vld [vmem:[%s0] sm:$0xf]
    %v52 = vld [vmem:[%s0 + $0x4] sm:$0xf]
    %v53 = vld [vmem:[%s0 + $0x8] sm:$0xf]
    %v54 = vld [vmem:[%s0 + $0xc] sm:$0xf]
    %v55 = vld [vmem:[%s0 + $0x10] sm:$0xf]
    %v56 = vld [vmem:[%s0 + $0x14] sm:$0xf]
    %v57 = vld [vmem:[%s0 + $0x18] sm:$0xf]
    %v58 = vld [vmem:[%s0 + $0x1c] sm:$0xf]
    %v59 = vld [vmem:[%s0 + $0x20] sm:$0xf]
    %v60 = vld [vmem:[%s0 + $0x24] sm:$0xf]
    %v61 = vld [vmem:[%s0 + $0x28] sm:$0xf]
    %v62 = vld [vmem:[%s0 + $0x2c] sm:$0xf]
    %v63 = vld [vmem:[%s0 + $0x30] sm:$0xf]
    %v64 = vld [vmem:[%s0 + $0x34] sm:$0xf]
    %v65 = vld [vmem:[%s0 + $0x38] sm:$0xf]
    %v66 = vld [vmem:[%s0 + $0x3c] sm:$0xf]
    %v67 = vunpack.c.l.bf16 %v51
    %v68 = vunpack.c.l.bf16 %v52
    %v69 = vunpack.c.l.bf16 %v53
    %v70 = vunpack.c.l.bf16 %v54
    %v71 = vunpack.c.l.bf16 %v55
    %v72 = vunpack.c.l.bf16 %v56
    %v73 = vunpack.c.l.bf16 %v57
    %v74 = vunpack.c.l.bf16 %v58
    %v75 = vunpack.c.l.bf16 %v59
    %v76 = vunpack.c.l.bf16 %v60
    %v77 = vunpack.c.l.bf16 %v61
    %v78 = vunpack.c.l.bf16 %v62
    %v79 = vunpack.c.l.bf16 %v63
    %v80 = vunpack.c.l.bf16 %v64
    %v81 = vunpack.c.l.bf16 %v65
    %v82 = vunpack.c.l.bf16 %v66
    %v83 = vld [vmem:[%s1] sm:$0xf]
    %v84 = vld [vmem:[%s1 + $0x4] sm:$0xf]
    %v85 = vld [vmem:[%s1 + $0x8] sm:$0xf]
    %v86 = vld [vmem:[%s1 + $0xc] sm:$0xf]
    %v87 = vld [vmem:[%s1 + $0x10] sm:$0xf]
    %v88 = vld [vmem:[%s1 + $0x14] sm:$0xf]
    %v89 = vld [vmem:[%s1 + $0x18] sm:$0xf]
    %v90 = vld [vmem:[%s1 + $0x1c] sm:$0xf]
    %v91 = vld [vmem:[%s1 + $0x20] sm:$0xf]
    %v92 = vld [vmem:[%s1 + $0x24] sm:$0xf]
    %v93 = vld [vmem:[%s1 + $0x28] sm:$0xf]
    %v94 = vld [vmem:[%s1 + $0x2c] sm:$0xf]
    %v95 = vld [vmem:[%s1 + $0x30] sm:$0xf]
    %v96 = vld [vmem:[%s1 + $0x34] sm:$0xf]
    %v97 = vld [vmem:[%s1 + $0x38] sm:$0xf]
    %v98 = vld [vmem:[%s1 + $0x3c] sm:$0xf]
    %v99 = vunpack.c.l.bf16 %v83
    %v100 = vunpack.c.l.bf16 %v84
    %v101 = vunpack.c.l.bf16 %v85
    %v102 = vunpack.c.l.bf16 %v86
    %v103 = vunpack.c.l.bf16 %v87
    %v104 = vunpack.c.l.bf16 %v88
    %v105 = vunpack.c.l.bf16 %v89
    %v106 = vunpack.c.l.bf16 %v90
    %v107 = vunpack.c.l.bf16 %v91
    %v108 = vunpack.c.l.bf16 %v92
    %v109 = vunpack.c.l.bf16 %v93
    %v110 = vunpack.c.l.bf16 %v94
    %v111 = vunpack.c.l.bf16 %v95
    %v112 = vunpack.c.l.bf16 %v96
    %v113 = vunpack.c.l.bf16 %v97
    %v114 = vunpack.c.l.bf16 %v98
    %v115 = vld [vmem:[%s2] sm:$0xff]
    %v116 = vld [vmem:[%s2 + $0x8] sm:$0xff]
    %v117 = vld [vmem:[%s3] sm:$0xf]
    %119 = vst [vmem:[#allocation1] ss:$4 sm:$0xff] %v117
    %v120 = vld.sshfl [vmem:[#allocation1] sm:$0xff pattern:$0x73625140]
    %v121 = vld.sshfl [vmem:[#allocation1 + $0x8] sm:$0xff pattern:$0x73625140]
    %vm122 = vcmask 15360
    %v124 = vsel %vm122, %v99, 0
    %v127 = vsel %vm122, %v100, 0
    %v130 = vsel %vm122, %v101, 0
    %v133 = vsel %vm122, %v102, 0
    %v136 = vsel %vm122, %v103, 0
    %v139 = vsel %vm122, %v104, 0
    %v142 = vsel %vm122, %v105, 0
    %v145 = vsel %vm122, %v106, 0
    %v148 = vsel %vm122, %v107, 0
    %v151 = vsel %vm122, %v108, 0
    %v154 = vsel %vm122, %v109, 0
    %v157 = vsel %vm122, %v110, 0
    %v160 = vsel %vm122, %v111, 0
    %v163 = vsel %vm122, %v112, 0
    %v166 = vsel %vm122, %v113, 0
    %v169 = vsel %vm122, %v114, 0
    %vm171 = vcmask 1041408
    %v172 = vsel %vm171, %v120, 0
    %v174 = vsel %vm171, %v121, 0
    %176 = vmatpush.msra.mxu0 0.0
    %177 = vmatpush.msra.mxu0 0.0
    %178 = vmatpush.msra.mxu0 0.0
    %179 = vmatpush.msra.mxu0 0.0
    %180 = vmatpush.msra.mxu0 0.0
    %181 = vmatpush.msra.mxu0 0.0
    %182 = vmatpush.msra.mxu0 0.0
    %183 = vmatpush.msra.mxu0 0.0
    %184 = vmatpush.msra.mxu0 0.0
    %185 = vmatpush.msra.mxu0 0.0
    %186 = vmatpush.msra.mxu0 0.0
    %187 = vmatpush.msra.mxu0 0.0
    %188 = vmatpush.msra.mxu0 0.0
    %189 = vmatpush.msra.mxu0 0.0
    %190 = vmatpush.msra.mxu0 0.0
    %191 = vmatpush.msra.mxu0 %v172
    %192 = vmatmul.f32.gmra.mxu0 %v124
    %v193 = vpop.f32.mrf.mxu0
    %v194 = vadd.f32 0.0, %v193
    %195 = vmatmul.f32.gmra.mxu0 %v127
    %v196 = vpop.f32.mrf.mxu0
    %v197 = vadd.f32 0.0, %v196
    %198 = vmatmul.f32.gmra.mxu0 %v130
    %v199 = vpop.f32.mrf.mxu0
    %v200 = vadd.f32 0.0, %v199
    %201 = vmatmul.f32.gmra.mxu0 %v133
    %v202 = vpop.f32.mrf.mxu0
    %v203 = vadd.f32 0.0, %v202
    %204 = vmatmul.f32.gmra.mxu0 %v136
    %v205 = vpop.f32.mrf.mxu0
    %v206 = vadd.f32 0.0, %v205
    %207 = vmatmul.f32.gmra.mxu0 %v139
    %v208 = vpop.f32.mrf.mxu0
    %v209 = vadd.f32 0.0, %v208
    %210 = vmatmul.f32.gmra.mxu0 %v142
    %v211 = vpop.f32.mrf.mxu0
    %v212 = vadd.f32 0.0, %v211
    %213 = vmatmul.f32.gmra.mxu0 %v145
    %v214 = vpop.f32.mrf.mxu0
    %v215 = vadd.f32 0.0, %v214
    %216 = vmatmul.f32.gmra.mxu0 %v148
    %v217 = vpop.f32.mrf.mxu0
    %v218 = vadd.f32 0.0, %v217
    %219 = vmatmul.f32.gmra.mxu0 %v151
    %v220 = vpop.f32.mrf.mxu0
    %v221 = vadd.f32 0.0, %v220
    %222 = vmatmul.f32.gmra.mxu0 %v154
    %v223 = vpop.f32.mrf.mxu0
    %v224 = vadd.f32 0.0, %v223
    %225 = vmatmul.f32.gmra.mxu0 %v157
    %v226 = vpop.f32.mrf.mxu0
    %v227 = vadd.f32 0.0, %v226
    %228 = vmatmul.f32.gmra.mxu0 %v160
    %v229 = vpop.f32.mrf.mxu0
    %v230 = vadd.f32 0.0, %v229
    %231 = vmatmul.f32.gmra.mxu0 %v163
    %v232 = vpop.f32.mrf.mxu0
    %v233 = vadd.f32 0.0, %v232
    %234 = vmatmul.f32.gmra.mxu0 %v166
    %v235 = vpop.f32.mrf.mxu0
    %v236 = vadd.f32 0.0, %v235
    %237 = vmatmul.f32.gmra.mxu0 %v169
    %v238 = vpop.f32.mrf.mxu0
    %v239 = vadd.f32 0.0, %v238
    %240 = vdwg.mxu0
    %241 = vmatpush.msra.mxu0 0.0
    %242 = vmatpush.msra.mxu0 0.0
    %243 = vmatpush.msra.mxu0 0.0
    %244 = vmatpush.msra.mxu0 0.0
    %245 = vmatpush.msra.mxu0 0.0
    %246 = vmatpush.msra.mxu0 0.0
    %247 = vmatpush.msra.mxu0 0.0
    %248 = vmatpush.msra.mxu0 0.0
    %249 = vmatpush.msra.mxu0 0.0
    %250 = vmatpush.msra.mxu0 0.0
    %251 = vmatpush.msra.mxu0 0.0
    %252 = vmatpush.msra.mxu0 0.0
    %253 = vmatpush.msra.mxu0 0.0
    %254 = vmatpush.msra.mxu0 0.0
    %255 = vmatpush.msra.mxu0 0.0
    %256 = vmatpush.msra.mxu0 %v174
    %257 = vmatmul.f32.gmra.mxu0 %v124
    %v258 = vpop.f32.mrf.mxu0
    %v259 = vadd.f32 0.0, %v258
    %260 = vmatmul.f32.gmra.mxu0 %v127
    %v261 = vpop.f32.mrf.mxu0
    %v262 = vadd.f32 0.0, %v261
    %263 = vmatmul.f32.gmra.mxu0 %v130
    %v264 = vpop.f32.mrf.mxu0
    %v265 = vadd.f32 0.0, %v264
    %266 = vmatmul.f32.gmra.mxu0 %v133
    %v267 = vpop.f32.mrf.mxu0
    %v268 = vadd.f32 0.0, %v267
    %269 = vmatmul.f32.gmra.mxu0 %v136
    %v270 = vpop.f32.mrf.mxu0
    %v271 = vadd.f32 0.0, %v270
    %272 = vmatmul.f32.gmra.mxu0 %v139
    %v273 = vpop.f32.mrf.mxu0
    %v274 = vadd.f32 0.0, %v273
    %275 = vmatmul.f32.gmra.mxu0 %v142
    %v276 = vpop.f32.mrf.mxu0
    %v277 = vadd.f32 0.0, %v276
    %278 = vmatmul.f32.gmra.mxu0 %v145
    %v279 = vpop.f32.mrf.mxu0
    %v280 = vadd.f32 0.0, %v279
    %281 = vmatmul.f32.gmra.mxu0 %v148
    %v282 = vpop.f32.mrf.mxu0
    %v283 = vadd.f32 0.0, %v282
    %284 = vmatmul.f32.gmra.mxu0 %v151
    %v285 = vpop.f32.mrf.mxu0
    %v286 = vadd.f32 0.0, %v285
    %287 = vmatmul.f32.gmra.mxu0 %v154
    %v288 = vpop.f32.mrf.mxu0
    %v289 = vadd.f32 0.0, %v288
    %290 = vmatmul.f32.gmra.mxu0 %v157
    %v291 = vpop.f32.mrf.mxu0
    %v292 = vadd.f32 0.0, %v291
    %293 = vmatmul.f32.gmra.mxu0 %v160
    %v294 = vpop.f32.mrf.mxu0
    %v295 = vadd.f32 0.0, %v294
    %296 = vmatmul.f32.gmra.mxu0 %v163
    %v297 = vpop.f32.mrf.mxu0
    %v298 = vadd.f32 0.0, %v297
    %299 = vmatmul.f32.gmra.mxu0 %v166
    %v300 = vpop.f32.mrf.mxu0
    %v301 = vadd.f32 0.0, %v300
    %302 = vmatmul.f32.gmra.mxu0 %v169
    %v303 = vpop.f32.mrf.mxu0
    %v304 = vadd.f32 0.0, %v303
    %305 = vdwg.mxu0
    %vm306 = vcmask 64512
    %v308 = vsel %vm306, %v67, 0
    %v311 = vsel %vm306, %v68, 0
    %v314 = vsel %vm306, %v69, 0
    %v317 = vsel %vm306, %v70, 0
    %v320 = vsel %vm306, %v71, 0
    %v323 = vsel %vm306, %v72, 0
    %v326 = vsel %vm306, %v73, 0
    %v329 = vsel %vm306, %v74, 0
    %v332 = vsel %vm306, %v75, 0
    %v335 = vsel %vm306, %v76, 0
    %v338 = vsel %vm306, %v77, 0
    %v341 = vsel %vm306, %v78, 0
    %v344 = vsel %vm306, %v79, 0
    %v347 = vsel %vm306, %v80, 0
    %v350 = vsel %vm306, %v81, 0
    %v353 = vsel %vm306, %v82, 0
    %355 = vmatpush.msra.mxu0 0.0
    %356 = vmatpush.msra.mxu0 0.0
    %357 = vmatpush.msra.mxu0 0.0
    %358 = vmatpush.msra.mxu0 0.0
    %359 = vmatpush.msra.mxu0 0.0
    %360 = vmatpush.msra.mxu0 0.0
    %361 = vmatpush.msra.mxu0 0.0
    %362 = vmatpush.msra.mxu0 0.0
    %363 = vmatpush.msra.mxu0 0.0
    %364 = vmatpush.msra.mxu0 0.0
    %365 = vmatpush.msra.mxu0 0.0
    %366 = vmatpush.msra.mxu0 0.0
    %367 = vmatpush.msra.mxu0 0.0
    %368 = vmatpush.msra.mxu0 0.0
    %369 = vmatpush.msra.mxu0 0.0
    %370 = vmatpush.msra.mxu0 %v115
    %371 = vmatmul.f32.gmra.mxu0 %v308
    %v372 = vpop.f32.mrf.mxu0
    %v373 = vadd.f32 %v194, %v372
    %374 = vmatmul.f32.gmra.mxu0 %v311
    %v375 = vpop.f32.mrf.mxu0
    %v376 = vadd.f32 %v197, %v375
    %377 = vmatmul.f32.gmra.mxu0 %v314
    %v378 = vpop.f32.mrf.mxu0
    %v379 = vadd.f32 %v200, %v378
    %380 = vmatmul.f32.gmra.mxu0 %v317
    %v381 = vpop.f32.mrf.mxu0
    %v382 = vadd.f32 %v203, %v381
    %383 = vmatmul.f32.gmra.mxu0 %v320
    %v384 = vpop.f32.mrf.mxu0
    %v385 = vadd.f32 %v206, %v384
    %386 = vmatmul.f32.gmra.mxu0 %v323
    %v387 = vpop.f32.mrf.mxu0
    %v388 = vadd.f32 %v209, %v387
    %389 = vmatmul.f32.gmra.mxu0 %v326
    %v390 = vpop.f32.mrf.mxu0
    %v391 = vadd.f32 %v212, %v390
    %392 = vmatmul.f32.gmra.mxu0 %v329
    %v393 = vpop.f32.mrf.mxu0
    %v394 = vadd.f32 %v215, %v393
    %395 = vmatmul.f32.gmra.mxu0 %v332
    %v396 = vpop.f32.mrf.mxu0
    %v397 = vadd.f32 %v218, %v396
    %398 = vmatmul.f32.gmra.mxu0 %v335
    %v399 = vpop.f32.mrf.mxu0
    %v400 = vadd.f32 %v221, %v399
    %401 = vmatmul.f32.gmra.mxu0 %v338
    %v402 = vpop.f32.mrf.mxu0
    %v403 = vadd.f32 %v224, %v402
    %404 = vmatmul.f32.gmra.mxu0 %v341
    %v405 = vpop.f32.mrf.mxu0
    %v406 = vadd.f32 %v227, %v405
    %407 = vmatmul.f32.gmra.mxu0 %v344
    %v408 = vpop.f32.mrf.mxu0
    %v409 = vadd.f32 %v230, %v408
    %410 = vmatmul.f32.gmra.mxu0 %v347
    %v411 = vpop.f32.mrf.mxu0
    %v412 = vadd.f32 %v233, %v411
    %413 = vmatmul.f32.gmra.mxu0 %v350
    %v414 = vpop.f32.mrf.mxu0
    %v415 = vadd.f32 %v236, %v414
    %416 = vmatmul.f32.gmra.mxu0 %v353
    %v417 = vpop.f32.mrf.mxu0
    %v418 = vadd.f32 %v239, %v417
    %419 = vdwg.mxu0
    %420 = vmatpush.msra.mxu0 0.0
    %421 = vmatpush.msra.mxu0 0.0
    %422 = vmatpush.msra.mxu0 0.0
    %423 = vmatpush.msra.mxu0 0.0
    %424 = vmatpush.msra.mxu0 0.0
    %425 = vmatpush.msra.mxu0 0.0
    %426 = vmatpush.msra.mxu0 0.0
    %427 = vmatpush.msra.mxu0 0.0
    %428 = vmatpush.msra.mxu0 0.0
    %429 = vmatpush.msra.mxu0 0.0
    %430 = vmatpush.msra.mxu0 0.0
    %431 = vmatpush.msra.mxu0 0.0
    %432 = vmatpush.msra.mxu0 0.0
    %433 = vmatpush.msra.mxu0 0.0
    %434 = vmatpush.msra.mxu0 0.0
    %435 = vmatpush.msra.mxu0 %v116
    %436 = vmatmul.f32.gmra.mxu0 %v308
    %v437 = vpop.f32.mrf.mxu0
    %v438 = vadd.f32 %v259, %v437
    %439 = vmatmul.f32.gmra.mxu0 %v311
    %v440 = vpop.f32.mrf.mxu0
    %v441 = vadd.f32 %v262, %v440
    %442 = vmatmul.f32.gmra.mxu0 %v314
    %v443 = vpop.f32.mrf.mxu0
    %v444 = vadd.f32 %v265, %v443
    %445 = vmatmul.f32.gmra.mxu0 %v317
    %v446 = vpop.f32.mrf.mxu0
    %v447 = vadd.f32 %v268, %v446
    %448 = vmatmul.f32.gmra.mxu0 %v320
    %v449 = vpop.f32.mrf.mxu0
    %v450 = vadd.f32 %v271, %v449
    %451 = vmatmul.f32.gmra.mxu0 %v323
    %v452 = vpop.f32.mrf.mxu0
    %v453 = vadd.f32 %v274, %v452
    %454 = vmatmul.f32.gmra.mxu0 %v326
    %v455 = vpop.f32.mrf.mxu0
    %v456 = vadd.f32 %v277, %v455
    %457 = vmatmul.f32.gmra.mxu0 %v329
    %v458 = vpop.f32.mrf.mxu0
    %v459 = vadd.f32 %v280, %v458
    %460 = vmatmul.f32.gmra.mxu0 %v332
    %v461 = vpop.f32.mrf.mxu0
    %v462 = vadd.f32 %v283, %v461
    %463 = vmatmul.f32.gmra.mxu0 %v335
    %v464 = vpop.f32.mrf.mxu0
    %v465 = vadd.f32 %v286, %v464
    %466 = vmatmul.f32.gmra.mxu0 %v338
    %v467 = vpop.f32.mrf.mxu0
    %v468 = vadd.f32 %v289, %v467
    %469 = vmatmul.f32.gmra.mxu0 %v341
    %v470 = vpop.f32.mrf.mxu0
    %v471 = vadd.f32 %v292, %v470
    %472 = vmatmul.f32.gmra.mxu0 %v344
    %v473 = vpop.f32.mrf.mxu0
    %v474 = vadd.f32 %v295, %v473
    %475 = vmatmul.f32.gmra.mxu0 %v347
    %v476 = vpop.f32.mrf.mxu0
    %v477 = vadd.f32 %v298, %v476
    %478 = vmatmul.f32.gmra.mxu0 %v350
    %v479 = vpop.f32.mrf.mxu0
    %v480 = vadd.f32 %v301, %v479
    %481 = vmatmul.f32.gmra.mxu0 %v353
    %v482 = vpop.f32.mrf.mxu0
    %v483 = vadd.f32 %v304, %v482
    %484 = vdwg.mxu0
    %v485 = vld [vmem:[%s4] sm:$0x3]
    %v487 = vperm.slane %v485, 0
    %v488 = vperm.slane %v485, 1
    %v491 = vadd.f32 %v373, %v487
    %v492 = vadd.f32 %v438, %v488
    %v493 = vadd.f32 %v376, %v487
    %v494 = vadd.f32 %v441, %v488
    %v495 = vadd.f32 %v379, %v487
    %v496 = vadd.f32 %v444, %v488
    %v497 = vadd.f32 %v382, %v487
    %v498 = vadd.f32 %v447, %v488
    %v499 = vadd.f32 %v385, %v487
    %v500 = vadd.f32 %v450, %v488
    %v501 = vadd.f32 %v388, %v487
    %v502 = vadd.f32 %v453, %v488
    %v503 = vadd.f32 %v391, %v487
    %v504 = vadd.f32 %v456, %v488
    %v505 = vadd.f32 %v394, %v487
    %v506 = vadd.f32 %v459, %v488
    %v507 = vadd.f32 %v397, %v487
    %v508 = vadd.f32 %v462, %v488
    %v509 = vadd.f32 %v400, %v487
    %v510 = vadd.f32 %v465, %v488
    %v511 = vadd.f32 %v403, %v487
    %v512 = vadd.f32 %v468, %v488
    %v513 = vadd.f32 %v406, %v487
    %v514 = vadd.f32 %v471, %v488
    %v515 = vadd.f32 %v409, %v487
    %v516 = vadd.f32 %v474, %v488
    %v517 = vadd.f32 %v412, %v487
    %v518 = vadd.f32 %v477, %v488
    %v519 = vadd.f32 %v415, %v487
    %v520 = vadd.f32 %v480, %v488
    %v521 = vadd.f32 %v418, %v487
    %v522 = vadd.f32 %v483, %v488
    %v523 = vmax.f32 %v491, 0.0
    %v524 = vmax.f32 %v492, 0.0
    %v525 = vmax.f32 %v493, 0.0
    %v526 = vmax.f32 %v494, 0.0
    %v527 = vmax.f32 %v495, 0.0
    %v528 = vmax.f32 %v496, 0.0
    %v529 = vmax.f32 %v497, 0.0
    %v530 = vmax.f32 %v498, 0.0
    %v531 = vmax.f32 %v499, 0.0
    %v532 = vmax.f32 %v500, 0.0
    %v533 = vmax.f32 %v501, 0.0
    %v534 = vmax.f32 %v502, 0.0
    %v535 = vmax.f32 %v503, 0.0
    %v536 = vmax.f32 %v504, 0.0
    %v537 = vmax.f32 %v505, 0.0
    %v538 = vmax.f32 %v506, 0.0
    %v539 = vmax.f32 %v507, 0.0
    %v540 = vmax.f32 %v508, 0.0
    %v541 = vmax.f32 %v509, 0.0
    %v542 = vmax.f32 %v510, 0.0
    %v543 = vmax.f32 %v511, 0.0
    %v544 = vmax.f32 %v512, 0.0
    %v545 = vmax.f32 %v513, 0.0
    %v546 = vmax.f32 %v514, 0.0
    %v547 = vmax.f32 %v515, 0.0
    %v548 = vmax.f32 %v516, 0.0
    %v549 = vmax.f32 %v517, 0.0
    %v550 = vmax.f32 %v518, 0.0
    %v551 = vmax.f32 %v519, 0.0
    %v552 = vmax.f32 %v520, 0.0
    %v553 = vmax.f32 %v521, 0.0
    %v554 = vmax.f32 %v522, 0.0
    %v555 = vpack.c.bf16 %v525, %v523
    %v556 = vpack.c.bf16 %v526, %v524
    %v557 = vpack.c.bf16 %v529, %v527
    %v558 = vpack.c.bf16 %v530, %v528
    %v559 = vpack.c.bf16 %v533, %v531
    %v560 = vpack.c.bf16 %v534, %v532
    %v561 = vpack.c.bf16 %v537, %v535
    %v562 = vpack.c.bf16 %v538, %v536
    %v563 = vpack.c.bf16 %v541, %v539
    %v564 = vpack.c.bf16 %v542, %v540
    %v565 = vpack.c.bf16 %v545, %v543
    %v566 = vpack.c.bf16 %v546, %v544
    %v567 = vpack.c.bf16 %v549, %v547
    %v568 = vpack.c.bf16 %v550, %v548
    %v569 = vpack.c.bf16 %v553, %v551
    %v570 = vpack.c.bf16 %v554, %v552
    %v571 = vld [vmem:[#allocation3] sm:$0xff]
    %v572 = vld [vmem:[#allocation3 + $0x8] sm:$0xff]
    %v573 = vld [vmem:[#allocation3 + $0x10] sm:$0xff]
    %v574 = vld [vmem:[#allocation3 + $0x18] sm:$0xff]
    %v575 = vld [vmem:[#allocation3 + $0x20] sm:$0xff]
    %v576 = vld [vmem:[#allocation3 + $0x28] sm:$0xff]
    %v577 = vld [vmem:[#allocation3 + $0x30] sm:$0xff]
    %v578 = vld [vmem:[#allocation3 + $0x38] sm:$0xff]
    %v579 = vld [vmem:[#allocation3 + $0x40] sm:$0xff]
    %v580 = vld [vmem:[#allocation3 + $0x48] sm:$0xff]
    %v581 = vld [vmem:[#allocation3 + $0x50] sm:$0xff]
    %v582 = vld [vmem:[#allocation3 + $0x58] sm:$0xff]
    %v583 = vld [vmem:[#allocation3 + $0x60] sm:$0xff]
    %v584 = vld [vmem:[#allocation3 + $0x68] sm:$0xff]
    %v585 = vld [vmem:[#allocation3 + $0x70] sm:$0xff]
    %v586 = vld [vmem:[#allocation3 + $0x78] sm:$0xff]
    %v587 = vld [vmem:[#allocation3 + $0x80] sm:$0xff]
    %v588 = vld [vmem:[#allocation3 + $0x88] sm:$0xff]
    %v589 = vld [vmem:[#allocation3 + $0x90] sm:$0xff]
    %v590 = vld [vmem:[#allocation3 + $0x98] sm:$0xff]
    %v591 = vld [vmem:[#allocation3 + $0xa0] sm:$0xff]
    %v592 = vld [vmem:[#allocation3 + $0xa8] sm:$0xff]
    %v593 = vld [vmem:[#allocation3 + $0xb0] sm:$0xff]
    %v594 = vld [vmem:[#allocation3 + $0xb8] sm:$0xff]
    %v595 = vld [vmem:[#allocation3 + $0xc0] sm:$0xff]
    %v596 = vld [vmem:[#allocation3 + $0xc8] sm:$0xff]
    %v597 = vld [vmem:[#allocation3 + $0xd0] sm:$0xff]
    %v598 = vld [vmem:[#allocation3 + $0xd8] sm:$0xff]
    %v599 = vld [vmem:[#allocation3 + $0xe0] sm:$0xff]
    %v600 = vld [vmem:[#allocation3 + $0xe8] sm:$0xff]
    %v601 = vld [vmem:[#allocation3 + $0xf0] sm:$0xff]
    %v602 = vld [vmem:[#allocation3 + $0xf8] sm:$0xff]
    %v603 = vld [vmem:[%s6] sm:$0x3]
    %v605 = vperm.slane %v603, 0
    %v606 = vperm.slane %v603, 1
    %v641 = vunpack.c.l.b16 %v571
    %v642 = vunpack.c.h.b16 %v571
    %v643 = vunpack.c.l.b16 %v572
    %v644 = vunpack.c.h.b16 %v572
    %v645 = vunpack.c.l.b16 %v573
    %v646 = vunpack.c.h.b16 %v573
    %v647 = vunpack.c.l.b16 %v574
    %v648 = vunpack.c.h.b16 %v574
    %v649 = vunpack.c.l.b16 %v575
    %v650 = vunpack.c.h.b16 %v575
    %v651 = vunpack.c.l.b16 %v576
    %v652 = vunpack.c.h.b16 %v576
    %v653 = vunpack.c.l.b16 %v577
    %v654 = vunpack.c.h.b16 %v577
    %v655 = vunpack.c.l.b16 %v578
    %v656 = vunpack.c.h.b16 %v578
    %v657 = vunpack.c.l.b16 %v579
    %v658 = vunpack.c.h.b16 %v579
    %v659 = vunpack.c.l.b16 %v580
    %v660 = vunpack.c.h.b16 %v580
    %v661 = vunpack.c.l.b16 %v581
    %v662 = vunpack.c.h.b16 %v581
    %v663 = vunpack.c.l.b16 %v582
    %v664 = vunpack.c.h.b16 %v582
    %v665 = vunpack.c.l.b16 %v583
    %v666 = vunpack.c.h.b16 %v583
    %v667 = vunpack.c.l.b16 %v584
    %v668 = vunpack.c.h.b16 %v584
    %v669 = vunpack.c.l.b16 %v585
    %v670 = vunpack.c.h.b16 %v585
    %v671 = vunpack.c.l.b16 %v586
    %v672 = vunpack.c.h.b16 %v586
    %v673 = vunpack.c.l.b16 %v587
    %v674 = vunpack.c.h.b16 %v587
    %v675 = vunpack.c.l.b16 %v588
    %v676 = vunpack.c.h.b16 %v588
    %v677 = vunpack.c.l.b16 %v589
    %v678 = vunpack.c.h.b16 %v589
    %v679 = vunpack.c.l.b16 %v590
    %v680 = vunpack.c.h.b16 %v590
    %v681 = vunpack.c.l.b16 %v591
    %v682 = vunpack.c.h.b16 %v591
    %v683 = vunpack.c.l.b16 %v592
    %v684 = vunpack.c.h.b16 %v592
    %v685 = vunpack.c.l.b16 %v593
    %v686 = vunpack.c.h.b16 %v593
    %v687 = vunpack.c.l.b16 %v594
    %v688 = vunpack.c.h.b16 %v594
    %v689 = vunpack.c.l.b16 %v595
    %v690 = vunpack.c.h.b16 %v595
    %v691 = vunpack.c.l.b16 %v596
    %v692 = vunpack.c.h.b16 %v596
    %v693 = vunpack.c.l.b16 %v597
    %v694 = vunpack.c.h.b16 %v597
    %v695 = vunpack.c.l.b16 %v598
    %v696 = vunpack.c.h.b16 %v598
    %v697 = vunpack.c.l.b16 %v599
    %v698 = vunpack.c.h.b16 %v599
    %v699 = vunpack.c.l.b16 %v600
    %v700 = vunpack.c.h.b16 %v600
    %v701 = vunpack.c.l.b16 %v601
    %v702 = vunpack.c.h.b16 %v601
    %v703 = vunpack.c.l.b16 %v602
    %v704 = vunpack.c.h.b16 %v602
    %v705 = vpack.c.b16 %v643, %v641
    %v706 = vpack.c.b16 %v644, %v642
    %v707 = vpack.c.b16 %v647, %v645
    %v708 = vpack.c.b16 %v648, %v646
    %v709 = vpack.c.b16 %v651, %v649
    %v710 = vpack.c.b16 %v652, %v650
    %v711 = vpack.c.b16 %v655, %v653
    %v712 = vpack.c.b16 %v656, %v654
    %v713 = vpack.c.b16 %v659, %v657
    %v714 = vpack.c.b16 %v660, %v658
    %v715 = vpack.c.b16 %v663, %v661
    %v716 = vpack.c.b16 %v664, %v662
    %v717 = vpack.c.b16 %v667, %v665
    %v718 = vpack.c.b16 %v668, %v666
    %v719 = vpack.c.b16 %v671, %v669
    %v720 = vpack.c.b16 %v672, %v670
    %v721 = vpack.c.b16 %v675, %v673
    %v722 = vpack.c.b16 %v676, %v674
    %v723 = vpack.c.b16 %v679, %v677
    %v724 = vpack.c.b16 %v680, %v678
    %v725 = vpack.c.b16 %v683, %v681
    %v726 = vpack.c.b16 %v684, %v682
    %v727 = vpack.c.b16 %v687, %v685
    %v728 = vpack.c.b16 %v688, %v686
    %v729 = vpack.c.b16 %v691, %v689
    %v730 = vpack.c.b16 %v692, %v690
    %v731 = vpack.c.b16 %v695, %v693
    %v732 = vpack.c.b16 %v696, %v694
    %v733 = vpack.c.b16 %v699, %v697
    %v734 = vpack.c.b16 %v700, %v698
    %v735 = vpack.c.b16 %v703, %v701
    %v736 = vpack.c.b16 %v704, %v702
    %769 = vmatpush.bf16.msra.mxu0 %v719
    %770 = vmatpush.bf16.msra.mxu0 %v717
    %771 = vmatpush.bf16.msra.mxu0 %v715
    %772 = vmatpush.bf16.msra.mxu0 %v713
    %773 = vmatpush.bf16.msra.mxu0 %v711
    %774 = vmatpush.bf16.msra.mxu0 %v709
    %775 = vmatpush.bf16.msra.mxu0 %v707
    %776 = vmatpush.bf16.msra.mxu0 %v705
    %777 = vmatmul.bf16.gmra.mxu0 %v555
    %v778 = vpop.f32.mrf.mxu0
    %v779 = vadd.f32 %v605, %v778
    %v780 = vpop.f32.mrf.mxu0
    %v781 = vadd.f32 %v605, %v780
    %782 = vmatmul.bf16.gmra.mxu0 %v557
    %v783 = vpop.f32.mrf.mxu0
    %v784 = vadd.f32 %v605, %v783
    %v785 = vpop.f32.mrf.mxu0
    %v786 = vadd.f32 %v605, %v785
    %787 = vmatmul.bf16.gmra.mxu0 %v559
    %v788 = vpop.f32.mrf.mxu0
    %v789 = vadd.f32 %v605, %v788
    %v790 = vpop.f32.mrf.mxu0
    %v791 = vadd.f32 %v605, %v790
    %792 = vmatmul.bf16.gmra.mxu0 %v561
    %v793 = vpop.f32.mrf.mxu0
    %v794 = vadd.f32 %v605, %v793
    %v795 = vpop.f32.mrf.mxu0
    %v796 = vadd.f32 %v605, %v795
    %797 = vmatmul.bf16.gmra.mxu0 %v563
    %v798 = vpop.f32.mrf.mxu0
    %v799 = vadd.f32 %v605, %v798
    %v800 = vpop.f32.mrf.mxu0
    %v801 = vadd.f32 %v605, %v800
    %802 = vmatmul.bf16.gmra.mxu0 %v565
    %v803 = vpop.f32.mrf.mxu0
    %v804 = vadd.f32 %v605, %v803
    %v805 = vpop.f32.mrf.mxu0
    %v806 = vadd.f32 %v605, %v805
    %807 = vmatmul.bf16.gmra.mxu0 %v567
    %v808 = vpop.f32.mrf.mxu0
    %v809 = vadd.f32 %v605, %v808
    %v810 = vpop.f32.mrf.mxu0
    %v811 = vadd.f32 %v605, %v810
    %812 = vmatmul.bf16.gmra.mxu0 %v569
    %v813 = vpop.f32.mrf.mxu0
    %v814 = vadd.f32 %v605, %v813
    %v815 = vpop.f32.mrf.mxu0
    %v816 = vadd.f32 %v605, %v815
    %817 = vdwg.mxu0
    %818 = vmatpush.bf16.msra.mxu0 %v735
    %819 = vmatpush.bf16.msra.mxu0 %v733
    %820 = vmatpush.bf16.msra.mxu0 %v731
    %821 = vmatpush.bf16.msra.mxu0 %v729
    %822 = vmatpush.bf16.msra.mxu0 %v727
    %823 = vmatpush.bf16.msra.mxu0 %v725
    %824 = vmatpush.bf16.msra.mxu0 %v723
    %825 = vmatpush.bf16.msra.mxu0 %v721
    %826 = vmatmul.bf16.gmra.mxu0 %v556
    %v827 = vpop.f32.mrf.mxu0
    %v828 = vadd.f32 %v779, %v827
    %v829 = vpop.f32.mrf.mxu0
    %v830 = vadd.f32 %v781, %v829
    %831 = vmatmul.bf16.gmra.mxu0 %v558
    %v832 = vpop.f32.mrf.mxu0
    %v833 = vadd.f32 %v784, %v832
    %v834 = vpop.f32.mrf.mxu0
    %v835 = vadd.f32 %v786, %v834
    %836 = vmatmul.bf16.gmra.mxu0 %v560
    %v837 = vpop.f32.mrf.mxu0
    %v838 = vadd.f32 %v789, %v837
    %v839 = vpop.f32.mrf.mxu0
    %v840 = vadd.f32 %v791, %v839
    %841 = vmatmul.bf16.gmra.mxu0 %v562
    %v842 = vpop.f32.mrf.mxu0
    %v843 = vadd.f32 %v794, %v842
    %v844 = vpop.f32.mrf.mxu0
    %v845 = vadd.f32 %v796, %v844
    %846 = vmatmul.bf16.gmra.mxu0 %v564
    %v847 = vpop.f32.mrf.mxu0
    %v848 = vadd.f32 %v799, %v847
    %v849 = vpop.f32.mrf.mxu0
    %v850 = vadd.f32 %v801, %v849
    %851 = vmatmul.bf16.gmra.mxu0 %v566
    %v852 = vpop.f32.mrf.mxu0
    %v853 = vadd.f32 %v804, %v852
    %v854 = vpop.f32.mrf.mxu0
    %v855 = vadd.f32 %v806, %v854
    %856 = vmatmul.bf16.gmra.mxu0 %v568
    %v857 = vpop.f32.mrf.mxu0
    %v858 = vadd.f32 %v809, %v857
    %v859 = vpop.f32.mrf.mxu0
    %v860 = vadd.f32 %v811, %v859
    %861 = vmatmul.bf16.gmra.mxu0 %v570
    %v862 = vpop.f32.mrf.mxu0
    %v863 = vadd.f32 %v814, %v862
    %v864 = vpop.f32.mrf.mxu0
    %v865 = vadd.f32 %v816, %v864
    %866 = vdwg.mxu0
    %867 = vmatpush.bf16.msra.mxu0 %v720
    %868 = vmatpush.bf16.msra.mxu0 %v718
    %869 = vmatpush.bf16.msra.mxu0 %v716
    %870 = vmatpush.bf16.msra.mxu0 %v714
    %871 = vmatpush.bf16.msra.mxu0 %v712
    %872 = vmatpush.bf16.msra.mxu0 %v710
    %873 = vmatpush.bf16.msra.mxu0 %v708
    %874 = vmatpush.bf16.msra.mxu0 %v706
    %875 = vmatmul.bf16.gmra.mxu0 %v555
    %v876 = vpop.f32.mrf.mxu0
    %v877 = vadd.f32 %v606, %v876
    %v878 = vpop.f32.mrf.mxu0
    %v879 = vadd.f32 %v606, %v878
    %880 = vmatmul.bf16.gmra.mxu0 %v557
    %v881 = vpop.f32.mrf.mxu0
    %v882 = vadd.f32 %v606, %v881
    %v883 = vpop.f32.mrf.mxu0
    %v884 = vadd.f32 %v606, %v883
    %885 = vmatmul.bf16.gmra.mxu0 %v559
    %v886 = vpop.f32.mrf.mxu0
    %v887 = vadd.f32 %v606, %v886
    %v888 = vpop.f32.mrf.mxu0
    %v889 = vadd.f32 %v606, %v888
    %890 = vmatmul.bf16.gmra.mxu0 %v561
    %v891 = vpop.f32.mrf.mxu0
    %v892 = vadd.f32 %v606, %v891
    %v893 = vpop.f32.mrf.mxu0
    %v894 = vadd.f32 %v606, %v893
    %895 = vmatmul.bf16.gmra.mxu0 %v563
    %v896 = vpop.f32.mrf.mxu0
    %v897 = vadd.f32 %v606, %v896
    %v898 = vpop.f32.mrf.mxu0
    %v899 = vadd.f32 %v606, %v898
    %900 = vmatmul.bf16.gmra.mxu0 %v565
    %v901 = vpop.f32.mrf.mxu0
    %v902 = vadd.f32 %v606, %v901
    %v903 = vpop.f32.mrf.mxu0
    %v904 = vadd.f32 %v606, %v903
    %905 = vmatmul.bf16.gmra.mxu0 %v567
    %v906 = vpop.f32.mrf.mxu0
    %v907 = vadd.f32 %v606, %v906
    %v908 = vpop.f32.mrf.mxu0
    %v909 = vadd.f32 %v606, %v908
    %910 = vmatmul.bf16.gmra.mxu0 %v569
    %v911 = vpop.f32.mrf.mxu0
    %v912 = vadd.f32 %v606, %v911
    %v913 = vpop.f32.mrf.mxu0
    %v914 = vadd.f32 %v606, %v913
    %915 = vdwg.mxu0
    %916 = vmatpush.bf16.msra.mxu0 %v736
    %917 = vmatpush.bf16.msra.mxu0 %v734
    %918 = vmatpush.bf16.msra.mxu0 %v732
    %919 = vmatpush.bf16.msra.mxu0 %v730
    %920 = vmatpush.bf16.msra.mxu0 %v728
    %921 = vmatpush.bf16.msra.mxu0 %v726
    %922 = vmatpush.bf16.msra.mxu0 %v724
    %923 = vmatpush.bf16.msra.mxu0 %v722
    %924 = vmatmul.bf16.gmra.mxu0 %v556
    %v925 = vpop.f32.mrf.mxu0
    %v926 = vadd.f32 %v877, %v925
    %v927 = vpop.f32.mrf.mxu0
    %v928 = vadd.f32 %v879, %v927
    %929 = vmatmul.bf16.gmra.mxu0 %v558
    %v930 = vpop.f32.mrf.mxu0
    %v931 = vadd.f32 %v882, %v930
    %v932 = vpop.f32.mrf.mxu0
    %v933 = vadd.f32 %v884, %v932
    %934 = vmatmul.bf16.gmra.mxu0 %v560
    %v935 = vpop.f32.mrf.mxu0
    %v936 = vadd.f32 %v887, %v935
    %v937 = vpop.f32.mrf.mxu0
    %v938 = vadd.f32 %v889, %v937
    %939 = vmatmul.bf16.gmra.mxu0 %v562
    %v940 = vpop.f32.mrf.mxu0
    %v941 = vadd.f32 %v892, %v940
    %v942 = vpop.f32.mrf.mxu0
    %v943 = vadd.f32 %v894, %v942
    %944 = vmatmul.bf16.gmra.mxu0 %v564
    %v945 = vpop.f32.mrf.mxu0
    %v946 = vadd.f32 %v897, %v945
    %v947 = vpop.f32.mrf.mxu0
    %v948 = vadd.f32 %v899, %v947
    %949 = vmatmul.bf16.gmra.mxu0 %v566
    %v950 = vpop.f32.mrf.mxu0
    %v951 = vadd.f32 %v902, %v950
    %v952 = vpop.f32.mrf.mxu0
    %v953 = vadd.f32 %v904, %v952
    %954 = vmatmul.bf16.gmra.mxu0 %v568
    %v955 = vpop.f32.mrf.mxu0
    %v956 = vadd.f32 %v907, %v955
    %v957 = vpop.f32.mrf.mxu0
    %v958 = vadd.f32 %v909, %v957
    %959 = vmatmul.bf16.gmra.mxu0 %v570
    %v960 = vpop.f32.mrf.mxu0
    %v961 = vadd.f32 %v912, %v960
    %v962 = vpop.f32.mrf.mxu0
    %v963 = vadd.f32 %v914, %v962
    %964 = vdwg.mxu0
    %v965 = vmax.f32 %v828, 0.0
    %v966 = vmax.f32 %v926, 0.0
    %v967 = vmax.f32 %v830, 0.0
    %v968 = vmax.f32 %v928, 0.0
    %v969 = vmax.f32 %v833, 0.0
    %v970 = vmax.f32 %v931, 0.0
    %v971 = vmax.f32 %v835, 0.0
    %v972 = vmax.f32 %v933, 0.0
    %v973 = vmax.f32 %v838, 0.0
    %v974 = vmax.f32 %v936, 0.0
    %v975 = vmax.f32 %v840, 0.0
    %v976 = vmax.f32 %v938, 0.0
    %v977 = vmax.f32 %v843, 0.0
    %v978 = vmax.f32 %v941, 0.0
    %v979 = vmax.f32 %v845, 0.0
    %v980 = vmax.f32 %v943, 0.0
    %v981 = vmax.f32 %v848, 0.0
    %v982 = vmax.f32 %v946, 0.0
    %v983 = vmax.f32 %v850, 0.0
    %v984 = vmax.f32 %v948, 0.0
    %v985 = vmax.f32 %v853, 0.0
    %v986 = vmax.f32 %v951, 0.0
    %v987 = vmax.f32 %v855, 0.0
    %v988 = vmax.f32 %v953, 0.0
    %v989 = vmax.f32 %v858, 0.0
    %v990 = vmax.f32 %v956, 0.0
    %v991 = vmax.f32 %v860, 0.0
    %v992 = vmax.f32 %v958, 0.0
    %v993 = vmax.f32 %v863, 0.0
    %v994 = vmax.f32 %v961, 0.0
    %v995 = vmax.f32 %v865, 0.0
    %v996 = vmax.f32 %v963, 0.0
    %v997 = vld [vmem:[%s7] sm:$0x3]
    %v998 = vpack.c.bf16 %v967, %v965
    %v999 = vpack.c.bf16 %v968, %v966
    %v1000 = vpack.c.bf16 %v971, %v969
    %v1001 = vpack.c.bf16 %v972, %v970
    %v1002 = vpack.c.bf16 %v975, %v973
    %v1003 = vpack.c.bf16 %v976, %v974
    %v1004 = vpack.c.bf16 %v979, %v977
    %v1005 = vpack.c.bf16 %v980, %v978
    %v1006 = vpack.c.bf16 %v983, %v981
    %v1007 = vpack.c.bf16 %v984, %v982
    %v1008 = vpack.c.bf16 %v987, %v985
    %v1009 = vpack.c.bf16 %v988, %v986
    %v1010 = vpack.c.bf16 %v991, %v989
    %v1011 = vpack.c.bf16 %v992, %v990
    %v1012 = vpack.c.bf16 %v995, %v993
    %v1013 = vpack.c.bf16 %v996, %v994
    %v1014 = vld [vmem:[#allocation2] sm:$0x1]
    %1016 = vset.pattern.permute.xlu0 0
    %1017 = vperm.xlu0 %1016, %v1014
    %v1018 = vpop.permute.xlu0 %1017
    %v1020 = vperm.slane %v1018, 0
    %1022 = vst [vmem:[#allocation1] ss:$9 sm:$0xff] %v997
    %v1023 = vld [vmem:[#allocation1] sm:$0xff]
    %v1024 = vld [vmem:[#allocation1 + $0x9] sm:$0xff]
    %1027 = vmatpush.bf16.xpose.msra.mxu0 %v1012
    %1028 = vmatpush.bf16.xpose.msra.mxu0 %v1010
    %1029 = vmatpush.bf16.xpose.msra.mxu0 %v1008
    %1030 = vmatpush.bf16.xpose.msra.mxu0 %v1006
    %1031 = vmatpush.bf16.xpose.msra.mxu0 %v1004
    %1032 = vmatpush.bf16.xpose.msra.mxu0 %v1002
    %1033 = vmatpush.bf16.xpose.msra.mxu0 %v1000
    %1034 = vmatpush.bf16.xpose.msra.mxu0 %v998
    %1035 = vmatmul.bf16.gmra.mxu0 %v1023
    %v1036 = vpop.f32.mrf.mxu0
    %v1037 = vadd.f32 %v1020, %v1036
    %v1038 = vpop.f32.mrf.mxu0
    %1039 = vdwg.mxu0
    %1040 = vmatpush.bf16.xpose.msra.mxu0 %v1013
    %1041 = vmatpush.bf16.xpose.msra.mxu0 %v1011
    %1042 = vmatpush.bf16.xpose.msra.mxu0 %v1009
    %1043 = vmatpush.bf16.xpose.msra.mxu0 %v1007
    %1044 = vmatpush.bf16.xpose.msra.mxu0 %v1005
    %1045 = vmatpush.bf16.xpose.msra.mxu0 %v1003
    %1046 = vmatpush.bf16.xpose.msra.mxu0 %v1001
    %1047 = vmatpush.bf16.xpose.msra.mxu0 %v999
    %1048 = vmatmul.bf16.gmra.mxu0 %v1024
    %v1049 = vpop.f32.mrf.mxu0
    %v1050 = vadd.f32 %v1037, %v1049
    %v1051 = vpop.f32.mrf.mxu0
    %1052 = vdwg.mxu0
    %1053 = vst [vmem:[#allocation6] sm:$0x1] %v1050
    // Predicated region
    $region42: #{tpu_custom_call.1} parent=1 // pred_check
      _
    $region43: #{tpu_custom_call.1} parent=1 // pred_check_branch
      %1055 = sbr.rel (0) target = $region45
    $region44: #{tpu_custom_call.1} parent=1 // pred_region
      %1057 = vsyncadd [#allocation5], 0
      %s1059 = sshll.u32 [#allocation6], 4
      %s1060 = int_to_ptr.vmem [resolvable:$true] %s1059
      %s1061 = sshll.u32 %s9, 4
      %s1062 = int_to_ptr.hbm [resolvable:$true] %s1061
      %1064 = dma.vmem_to_hbm [thread:$0]  %s1060, 16, %s1062, [#allocation5]
    $region45: #{tpu_custom_call.1} parent=1 // pred_fallthru
      _
    // Predicated region
    $region46: #{tpu_custom_call.1} parent=1 // pred_check
      _
    $region47: #{tpu_custom_call.1} parent=1 // pred_check_branch
      %1066 = sbr.rel (0) target = $region49
    $region48: #{tpu_custom_call.1} parent=1 // pred_region
      %1068 = dma.done [#allocation5], 16
    $region49: #{tpu_custom_call.1} parent=1 // pred_fallthru
      _
    %1069 = vsyncpa [#allocation4], 1
    %1070 = vsyncpa [#allocation5], 1

</llo_original>
